<compile_context>
chip_gen: v7x
topology: tpu7x:2x2x1
jax: 0.10.0
libtpu: 0.0.40
codegen_flags: <defaults>
</compile_context>

<pallas_src>
import functools
import math

import jax
import jax.numpy as jnp
from jax.experimental import pallas as pl
from jax.experimental.pallas import tpu as pltpu

_LANE = 128      # lane width  (last-dim multiple)
_SUBLANE = 8     # sublane width (second-to-last-dim multiple)


def _round_up(x: int, m: int) -> int:
    return ((x + m - 1) // m) * m


def _nbytes(a) -> int:
    return int(a.size) * jnp.dtype(a.dtype).itemsize


# ---------------------------------------------------------------------------
# Fused MLP kernel: one batch tile per grid step, all layers inside the body.
# ---------------------------------------------------------------------------
def _mlp_kernel(x_ref, w_in_ref, b_in_ref, wf_ref, bf_ref, w_out_ref,
                b_out_ref, o_ref, act_ref):
    # ---- in_proj: rectangular (D_in -> D_h), f32 accumulate on the MXU ----
    h = jnp.dot(x_ref[...], w_in_ref[...], preferred_element_type=jnp.float32)
    act_ref[...] = (h + b_in_ref[...]).astype(act_ref.dtype)

    # ---- hidden FeedForward layers: Linear + ReLU, statically unrolled ----
    # (static Python indices -> zero-cost static Ref slices into the stack;
    #  the act_ref store between iterations carries the data dependency)
    n_ff = wf_ref.shape[0]
    for i in range(n_ff):
        y = jnp.dot(act_ref[...], wf_ref[i],
                    preferred_element_type=jnp.float32)
        y = jnp.maximum(y + bf_ref[i], 0.0)          # bias + ReLU on f32 acc
        act_ref[...] = y.astype(act_ref.dtype)

    # ---- out_proj: rectangular (D_h -> D_out), single lane-dense store ----
    y = jnp.dot(act_ref[...], w_out_ref[...],
                preferred_element_type=jnp.float32)
    o_ref[...] = (y + b_out_ref[...]).astype(o_ref.dtype)


def fused_mlp(x_pad, w_in, b_in, wf, bf, w_out, b_out, *, b_tile):
    """x_pad: (B_pad, D_in); w_in: (D_in, D_h); wf: (L, D_h, D_h);
    w_out: (D_h, D_out); biases are (1, D_h)/(L, 1, D_h)/(1, D_out)."""
    B_pad, D_in = x_pad.shape
    D_h = w_in.shape[1]
    n_ff = wf.shape[0]
    D_out = w_out.shape[1]
    grid_m = B_pad // b_tile
    cdt = x_pad.dtype                     # compute/stream dtype (bf16)
    out_dtype = jnp.float32               # final result leaves in f32

    # ---- explicit VMEM budget (portable down to v7x's 64 MiB) ----
    weight_bytes = sum(_nbytes(a) for a in (w_in, b_in, wf, bf, w_out, b_out))
    io_bytes = (b_tile * D_in * jnp.dtype(cdt).itemsize
                + b_tile * D_out * jnp.dtype(out_dtype).itemsize)
    scratch_bytes = b_tile * D_h * jnp.dtype(cdt).itemsize
    needed = 2 * (weight_bytes + io_bytes) + scratch_bytes   # 2x = double buf
    vmem_limit = min(max(int(needed * 1.25) + (1 << 20), 32 << 20), 64 << 20)

    flops = 2 * B_pad * (D_in * D_h + n_ff * D_h * D_h + D_h * D_out)
    bytes_accessed = (weight_bytes + _nbytes(x_pad)
                      + B_pad * D_out * jnp.dtype(out_dtype).itemsize)

    return pl.pallas_call(
        _mlp_kernel,
        out_shape=jax.ShapeDtypeStruct((B_pad, D_out), out_dtype),
        grid_spec=pltpu.PrefetchScalarGridSpec(
            num_scalar_prefetch=0,
            grid=(grid_m,),                                    # batch tiles
            in_specs=[
                pl.BlockSpec((b_tile, D_in), lambda m: (m, 0)),      # x tile
                pl.BlockSpec((D_in, D_h), lambda m: (0, 0)),         # in_proj W
                pl.BlockSpec((1, D_h), lambda m: (0, 0)),            # in_proj b
                pl.BlockSpec((n_ff, D_h, D_h), lambda m: (0, 0, 0)), # ff W stack
                pl.BlockSpec((n_ff, 1, D_h), lambda m: (0, 0, 0)),   # ff b stack
                pl.BlockSpec((D_h, D_out), lambda m: (0, 0)),        # out_proj W
                pl.BlockSpec((1, D_out), lambda m: (0, 0)),          # out_proj b
            ],
            out_specs=pl.BlockSpec((b_tile, D_out), lambda m: (m, 0)),
            scratch_shapes=[pltpu.VMEM((b_tile, D_h), cdt)],   # resident act
        ),
        # Batch tiles are independent -> "parallel" (shards across both TCs
        # on v7x; harmless on single-TC v5e/v6e).
        compiler_params=pltpu.CompilerParams(
            dimension_semantics=("parallel",),
            vmem_limit_bytes=vmem_limit,
        ),
        cost_estimate=pl.CostEstimate(
            flops=flops, transcendentals=0, bytes_accessed=bytes_accessed),
    )(x_pad, w_in, b_in, wf, bf, w_out, b_out)


# ---------------------------------------------------------------------------
# Parameter construction (mimics nn.Linear default init; W stored as (in, out))
# ---------------------------------------------------------------------------
def _init_linear(key, fan_in, fan_out, dtype=jnp.float32):
    kw, kb = jax.random.split(key)
    bound = 1.0 / math.sqrt(fan_in)
    w = jax.random.uniform(kw, (fan_in, fan_out), dtype, -bound, bound)
    b = jax.random.uniform(kb, (fan_out,), dtype, -bound, bound)
    return w, b


def make_simple_mlp_params(key, input_t, vector_size, num_layers, hidden_size,
                           out_size, dtype=jnp.float32):
    keys = jax.random.split(key, num_layers + 2)
    return {
        "in_proj": _init_linear(keys[0], vector_size * input_t, hidden_size, dtype),
        "ff": [_init_linear(keys[1 + i], hidden_size, hidden_size, dtype)
               for i in range(num_layers)],
        "out_proj": _init_linear(keys[num_layers + 1], hidden_size, out_size, dtype),
    }


def pack_params(params, dtype=jnp.bfloat16):
    """Rectangular, lane-aligned packing: in_proj (D_in,D_h), hidden stack
    (L,D_h,D_h), out_proj (D_h,D_out).  Cast to the streaming dtype here."""
    w_in, b_in = params["in_proj"]
    ffs = params["ff"]
    w_out, b_out = params["out_proj"]
    assert len(ffs) >= 1, "pack_params requires num_layers >= 1"

    din, hidden = w_in.shape
    out_size = w_out.shape[1]
    D_in = _round_up(din, _LANE)
    D_h = _round_up(hidden, _LANE)
    D_out = _round_up(out_size, _LANE)

    def pad_w(w, r, c):
        return jnp.zeros((r, c), dtype).at[:w.shape[0], :w.shape[1]].set(
            w.astype(dtype))

    def pad_b(b, c):
        return jnp.zeros((1, c), dtype).at[0, :b.shape[0]].set(b.astype(dtype))

    packed = {
        "w_in": pad_w(w_in, D_in, D_h),
        "b_in": pad_b(b_in, D_h),
        "wf": jnp.stack([pad_w(w, D_h, D_h) for (w, _) in ffs]),
        "bf": jnp.stack([pad_b(b, D_h) for (_, b) in ffs]),
        "w_out": pad_w(w_out, D_h, D_out),
        "b_out": pad_b(b_out, D_out),
    }
    return packed, out_size


# ---------------------------------------------------------------------------
# Forward pass (jitted; padding/slicing in plain JAX, all compute in Pallas)
# ---------------------------------------------------------------------------
@functools.partial(jax.jit, static_argnames=("out_size",))
def simple_mlp_forward(packed, idx, *, out_size):
    B = idx.shape[0]
    w_in = packed["w_in"]
    D_in = w_in.shape[0]
    dtype = w_in.dtype

    x = idx.reshape(B, -1).astype(dtype)               # idx.view(B, -1)
    din = x.shape[1]

    b_tile = min(256, _round_up(max(B, 1), _SUBLANE))  # batch tile (M shape)
    B_pad = _round_up(max(B, 1), b_tile)
    x_pad = jnp.zeros((B_pad, D_in), dtype).at[:B, :din].set(x)

    y_pad = fused_mlp(x_pad, packed["w_in"], packed["b_in"], packed["wf"],
                      packed["bf"], packed["w_out"], packed["b_out"],
                      b_tile=b_tile)
    return y_pad[:B, :out_size]


if __name__ == "__main__":
    # Small shapes consistent with SimpleMLP(input_t, vector_size, num_layers,
    # hidden_size, out_size)
    B, INPUT_T, VECTOR_SIZE = 2, 4, 16
    NUM_LAYERS, HIDDEN, OUT = 2, 32, 8

    key = jax.random.PRNGKey(0)
    k_params, k_x = jax.random.split(key)

    params = make_simple_mlp_params(
        k_params, INPUT_T, VECTOR_SIZE, NUM_LAYERS, HIDDEN, OUT
    )
    packed, out_size = pack_params(params, dtype=jnp.bfloat16)

    idx = jax.random.normal(k_x, (B, INPUT_T, VECTOR_SIZE), dtype=jnp.float32)

    out = simple_mlp_forward(packed, idx, out_size=out_size)
    jax.block_until_ready(out)

    # Reference check in plain JAX / f32 (same math as the PyTorch module).
    # The kernel streams bf16 (f32 accumulate), so allow bf16-level tolerance.
    def ref_forward(params, idx):
        x = idx.reshape(idx.shape[0], -1)
        w, b = params["in_proj"]
        x = x @ w + b
        for (wf, bf) in params["ff"]:
            x = jnp.maximum(x @ wf + bf, 0.0)
        wo, bo = params["out_proj"]
        return x @ wo + bo

    ref = ref_forward(params, idx)
    assert out.shape == (B, OUT), out.shape
    out_f32 = out.astype(jnp.float32)
    assert jnp.allclose(out_f32, ref, atol=5e-2, rtol=5e-2), float(
        jnp.max(jnp.abs(out_f32 - ref))
    )

    print("KERNEL_OK")
</pallas_src>

<mosaic_0001>
module attributes {stable_mosaic.version = 11 : i64} {
  func.func @_mlp_kernel(%arg0: i32, %arg1: memref<8x128xbf16, #tpu.memory_space<vmem>>, %arg2: memref<128x128xbf16, #tpu.memory_space<vmem>>, %arg3: memref<1x128xbf16, #tpu.memory_space<vmem>>, %arg4: memref<2x128x128xbf16, #tpu.memory_space<vmem>>, %arg5: memref<2x1x128xbf16, #tpu.memory_space<vmem>>, %arg6: memref<128x128xbf16, #tpu.memory_space<vmem>>, %arg7: memref<1x128xbf16, #tpu.memory_space<vmem>>, %arg8: memref<8x128xf32, #tpu.memory_space<vmem>>, %arg9: memref<8x128xbf16, #tpu.memory_space<vmem>>) attributes {dimension_semantics = [#tpu.dimension_semantics<parallel>], iteration_bounds = array<i64: 1>, scalar_prefetch = 0 : i64, scratch_operands = 1 : i64, tpu.core_type = #tpu.core_type<tc>, window_params = [{transform_indices = @transform_0, window_bounds = array<i64: 8, 128>}, {pipeline_mode = #tpu.pipeline_mode<synchronous>, transform_indices = @transform_1, window_bounds = array<i64: 128, 128>}, {pipeline_mode = #tpu.pipeline_mode<synchronous>, transform_indices = @transform_2, window_bounds = array<i64: 1, 128>}, {pipeline_mode = #tpu.pipeline_mode<synchronous>, transform_indices = @transform_3, window_bounds = array<i64: 2, 128, 128>}, {pipeline_mode = #tpu.pipeline_mode<synchronous>, transform_indices = @transform_4, window_bounds = array<i64: 2, 1, 128>}, {pipeline_mode = #tpu.pipeline_mode<synchronous>, transform_indices = @transform_5, window_bounds = array<i64: 128, 128>}, {pipeline_mode = #tpu.pipeline_mode<synchronous>, transform_indices = @transform_6, window_bounds = array<i64: 1, 128>}, {transform_indices = @transform_7, window_bounds = array<i64: 8, 128>}]} {
    %c0 = arith.constant 0 : index
    %c0_0 = arith.constant 0 : index
    %0 = vector.load %arg1[%c0, %c0_0] : memref<8x128xbf16, #tpu.memory_space<vmem>>, vector<8x128xbf16>
    %c0_1 = arith.constant 0 : index
    %c0_2 = arith.constant 0 : index
    %1 = vector.load %arg2[%c0_1, %c0_2] : memref<128x128xbf16, #tpu.memory_space<vmem>>, vector<128x128xbf16>
    %cst = arith.constant dense<0.000000e+00> : vector<8x128xf32>
    %2 = tpu.matmul %0, %1, %cst {dimension_numbers = #tpu.dot_dimension_numbers<[1], [0], [0], [1], [0, 0, 1, 1], [], []>} : vector<8x128xbf16>, vector<128x128xbf16>, vector<8x128xf32> -> vector<8x128xf32>
    %c0_3 = arith.constant 0 : index
    %c0_4 = arith.constant 0 : index
    %3 = vector.load %arg3[%c0_3, %c0_4] : memref<1x128xbf16, #tpu.memory_space<vmem>>, vector<1x128xbf16>
    %4 = arith.extf %3 : vector<1x128xbf16> to vector<1x128xf32>
    %5 = vector.broadcast %4 : vector<1x128xf32> to vector<8x128xf32>
    %6 = arith.addf %2, %5 : vector<8x128xf32>
    %7 = arith.truncf %6 : vector<8x128xf32> to vector<8x128xbf16>
    %c0_5 = arith.constant 0 : index
    %c0_6 = arith.constant 0 : index
    %8 = vector.load %arg9[%c0_5, %c0_6] : memref<8x128xbf16, #tpu.memory_space<vmem>>, vector<8x128xbf16>
    tpu.vector_store %arg9[%c0_5, %c0_6], %7 {strides = array<i32>} : memref<8x128xbf16, #tpu.memory_space<vmem>>, vector<8x128xbf16>,
    %c0_7 = arith.constant 0 : index
    %c0_8 = arith.constant 0 : index
    %9 = vector.load %arg9[%c0_7, %c0_8] : memref<8x128xbf16, #tpu.memory_space<vmem>>, vector<8x128xbf16>
    %c0_9 = arith.constant 0 : index
    %c0_10 = arith.constant 0 : index
    %c0_11 = arith.constant 0 : index
    %10 = vector.load %arg4[%c0_9, %c0_10, %c0_11] : memref<2x128x128xbf16, #tpu.memory_space<vmem>>, vector<1x128x128xbf16>
    %11 = vector.shape_cast %10 : vector<1x128x128xbf16> to vector<128x128xbf16>
    %cst_12 = arith.constant dense<0.000000e+00> : vector<8x128xf32>
    %12 = tpu.matmul %9, %11, %cst_12 {dimension_numbers = #tpu.dot_dimension_numbers<[1], [0], [0], [1], [0, 0, 1, 1], [], []>} : vector<8x128xbf16>, vector<128x128xbf16>, vector<8x128xf32> -> vector<8x128xf32>
    %c0_13 = arith.constant 0 : index
    %c0_14 = arith.constant 0 : index
    %c0_15 = arith.constant 0 : index
    %13 = vector.load %arg5[%c0_13, %c0_14, %c0_15] : memref<2x1x128xbf16, #tpu.memory_space<vmem>>, vector<1x1x128xbf16>
    %14 = vector.shape_cast %13 : vector<1x1x128xbf16> to vector<1x128xbf16>
    %15 = arith.extf %14 : vector<1x128xbf16> to vector<1x128xf32>
    %16 = vector.broadcast %15 : vector<1x128xf32> to vector<8x128xf32>
    %17 = arith.addf %12, %16 : vector<8x128xf32>
    %cst_16 = arith.constant 0.000000e+00 : f32
    %18 = vector.broadcast %cst_16 : f32 to vector<8x128xf32>
    %19 = arith.maximumf %17, %18 : vector<8x128xf32>
    %20 = arith.truncf %19 : vector<8x128xf32> to vector<8x128xbf16>
    %c0_17 = arith.constant 0 : index
    %c0_18 = arith.constant 0 : index
    %21 = vector.load %arg9[%c0_17, %c0_18] : memref<8x128xbf16, #tpu.memory_space<vmem>>, vector<8x128xbf16>
    tpu.vector_store %arg9[%c0_17, %c0_18], %20 {strides = array<i32>} : memref<8x128xbf16, #tpu.memory_space<vmem>>, vector<8x128xbf16>,
    %c0_19 = arith.constant 0 : index
    %c0_20 = arith.constant 0 : index
    %22 = vector.load %arg9[%c0_19, %c0_20] : memref<8x128xbf16, #tpu.memory_space<vmem>>, vector<8x128xbf16>
    %c1 = arith.constant 1 : index
    %c0_21 = arith.constant 0 : index
    %c0_22 = arith.constant 0 : index
    %23 = vector.load %arg4[%c1, %c0_21, %c0_22] : memref<2x128x128xbf16, #tpu.memory_space<vmem>>, vector<1x128x128xbf16>
    %24 = vector.shape_cast %23 : vector<1x128x128xbf16> to vector<128x128xbf16>
    %cst_23 = arith.constant dense<0.000000e+00> : vector<8x128xf32>
    %25 = tpu.matmul %22, %24, %cst_23 {dimension_numbers = #tpu.dot_dimension_numbers<[1], [0], [0], [1], [0, 0, 1, 1], [], []>} : vector<8x128xbf16>, vector<128x128xbf16>, vector<8x128xf32> -> vector<8x128xf32>
    %c1_24 = arith.constant 1 : index
    %c0_25 = arith.constant 0 : index
    %c0_26 = arith.constant 0 : index
    %26 = vector.load %arg5[%c1_24, %c0_25, %c0_26] : memref<2x1x128xbf16, #tpu.memory_space<vmem>>, vector<1x1x128xbf16>
    %27 = vector.shape_cast %26 : vector<1x1x128xbf16> to vector<1x128xbf16>
    %28 = arith.extf %27 : vector<1x128xbf16> to vector<1x128xf32>
    %29 = vector.broadcast %28 : vector<1x128xf32> to vector<8x128xf32>
    %30 = arith.addf %25, %29 : vector<8x128xf32>
    %cst_27 = arith.constant 0.000000e+00 : f32
    %31 = vector.broadcast %cst_27 : f32 to vector<8x128xf32>
    %32 = arith.maximumf %30, %31 : vector<8x128xf32>
    %33 = arith.truncf %32 : vector<8x128xf32> to vector<8x128xbf16>
    %c0_28 = arith.constant 0 : index
    %c0_29 = arith.constant 0 : index
    %34 = vector.load %arg9[%c0_28, %c0_29] : memref<8x128xbf16, #tpu.memory_space<vmem>>, vector<8x128xbf16>
    tpu.vector_store %arg9[%c0_28, %c0_29], %33 {strides = array<i32>} : memref<8x128xbf16, #tpu.memory_space<vmem>>, vector<8x128xbf16>,
    %c0_30 = arith.constant 0 : index
    %c0_31 = arith.constant 0 : index
    %35 = vector.load %arg9[%c0_30, %c0_31] : memref<8x128xbf16, #tpu.memory_space<vmem>>, vector<8x128xbf16>
    %c0_32 = arith.constant 0 : index
    %c0_33 = arith.constant 0 : index
    %36 = vector.load %arg6[%c0_32, %c0_33] : memref<128x128xbf16, #tpu.memory_space<vmem>>, vector<128x128xbf16>
    %cst_34 = arith.constant dense<0.000000e+00> : vector<8x128xf32>
    %37 = tpu.matmul %35, %36, %cst_34 {dimension_numbers = #tpu.dot_dimension_numbers<[1], [0], [0], [1], [0, 0, 1, 1], [], []>} : vector<8x128xbf16>, vector<128x128xbf16>, vector<8x128xf32> -> vector<8x128xf32>
    %c0_35 = arith.constant 0 : index
    %c0_36 = arith.constant 0 : index
    %38 = vector.load %arg7[%c0_35, %c0_36] : memref<1x128xbf16, #tpu.memory_space<vmem>>, vector<1x128xbf16>
    %39 = arith.extf %38 : vector<1x128xbf16> to vector<1x128xf32>
    %40 = vector.broadcast %39 : vector<1x128xf32> to vector<8x128xf32>
    %41 = arith.addf %37, %40 : vector<8x128xf32>
    %c0_37 = arith.constant 0 : index
    %c0_38 = arith.constant 0 : index
    %42 = vector.load %arg8[%c0_37, %c0_38] : memref<8x128xf32, #tpu.memory_space<vmem>>, vector<8x128xf32>
    tpu.vector_store %arg8[%c0_37, %c0_38], %41 {strides = array<i32>} : memref<8x128xf32, #tpu.memory_space<vmem>>, vector<8x128xf32>,
    return
  }
  func.func @transform_0(%arg0: i32) -> (i32, i32) {
    %c0_i32 = arith.constant 0 : i32
    %c0_i32_0 = arith.constant 0 : i32
    return %arg0, %c0_i32 : i32, i32
  }
  func.func @transform_1(%arg0: i32) -> (i32, i32) {
    %c0_i32 = arith.constant 0 : i32
    %c0_i32_0 = arith.constant 0 : i32
    %c0_i32_1 = arith.constant 0 : i32
    return %c0_i32, %c0_i32_0 : i32, i32
  }
  func.func @transform_2(%arg0: i32) -> (i32, i32) {
    %c0_i32 = arith.constant 0 : i32
    %c0_i32_0 = arith.constant 0 : i32
    %c0_i32_1 = arith.constant 0 : i32
    return %c0_i32, %c0_i32_0 : i32, i32
  }
  func.func @transform_3(%arg0: i32) -> (i32, i32, i32) {
    %c0_i32 = arith.constant 0 : i32
    %c0_i32_0 = arith.constant 0 : i32
    %c0_i32_1 = arith.constant 0 : i32
    %c0_i32_2 = arith.constant 0 : i32
    return %c0_i32, %c0_i32_0, %c0_i32_1 : i32, i32, i32
  }
  func.func @transform_4(%arg0: i32) -> (i32, i32, i32) {
    %c0_i32 = arith.constant 0 : i32
    %c0_i32_0 = arith.constant 0 : i32
    %c0_i32_1 = arith.constant 0 : i32
    %c0_i32_2 = arith.constant 0 : i32
    return %c0_i32, %c0_i32_0, %c0_i32_1 : i32, i32, i32
  }
  func.func @transform_5(%arg0: i32) -> (i32, i32) {
    %c0_i32 = arith.constant 0 : i32
    %c0_i32_0 = arith.constant 0 : i32
    %c0_i32_1 = arith.constant 0 : i32
    return %c0_i32, %c0_i32_0 : i32, i32
  }
  func.func @transform_6(%arg0: i32) -> (i32, i32) {
    %c0_i32 = arith.constant 0 : i32
    %c0_i32_0 = arith.constant 0 : i32
    %c0_i32_1 = arith.constant 0 : i32
    return %c0_i32, %c0_i32_0 : i32, i32
  }
  func.func @transform_7(%arg0: i32) -> (i32, i32) {
    %c0_i32 = arith.constant 0 : i32
    %c0_i32_0 = arith.constant 0 : i32
    return %arg0, %c0_i32 : i32, i32
  }
}

</mosaic_0001>

<llo_original>
// kernel: simple_mlp_forward.1
$region0: #{simple_mlp_forward.1}
  #allocation0 [shape = 'u32[]', space=smem, size = 0x4, offset = 0x4, fixed_abs, tag = 'smem constant byte address 0x4 - core index']
  #allocation1 [shape = 'u32[144,128]{1,0:T(1,128)}', space=vmem, size = 0x12000, scoped, tag = 'internal scratch']
  #allocation2 [shape = 'bf16[8,128]{1,0:T(8,128)(2,1)}', space=vmem, size = 0x800, scoped, tag = 'scratch operand']
  %s0 = inlined_call_operand.vmem [shape: bf16[8,128], index: 0, kind: input, shape index: {}]
  %s1 = inlined_call_operand.hbm [shape: bf16[128,128], index: 1, kind: input, shape index: {}]
  %s2 = inlined_call_operand.vmem [shape: bf16[1,128], index: 2, kind: input, shape index: {}]
  %s3 = inlined_call_operand.hbm [shape: bf16[2,128,128], index: 3, kind: input, shape index: {}]
  %s4 = inlined_call_operand.vmem [shape: bf16[2,1,128], index: 4, kind: input, shape index: {}]
  %s5 = inlined_call_operand.hbm [shape: bf16[128,128], index: 5, kind: input, shape index: {}]
  %s6 = inlined_call_operand.vmem [shape: bf16[1,128], index: 6, kind: input, shape index: {}]
  %s7 = inlined_call_operand.vmem [shape: f32[8,128], index: 7, kind: output, shape index: {}]
  %s8 = sld [smem:[#allocation0]]
  $region50: #{simple_mlp_forward.1} parent=0
    _
  %s10 = ssub.s32 1, %s8
  %s11 = scalar_select 0, %s10, %s8
  $region1: #{simple_mlp_forward.1} parent=0
    #allocation3 [shape = 'u8[32768]{0}', space=vmem, size = 0x8000, scoped, tag = 'input window, operand 1, single buffered']
    #allocation4 [shape = 's32[1]{0}', space=sflag, size = 0x4, scoped, tag = 'scoped memory for simple_mlp_forward.1']
    #allocation5 [shape = 'u8[65536]{0}', space=vmem, size = 0x10000, scoped, tag = 'input window, operand 3, single buffered']
    #allocation6 [shape = 's32[1]{0}', space=sflag, size = 0x4, scoped, tag = 'scoped memory for simple_mlp_forward.1']
    #allocation7 [shape = 'u8[32768]{0}', space=vmem, size = 0x8000, scoped, tag = 'input window, operand 5, single buffered']
    %12 = vsyncpa [#allocation4], 0
    %13 = vsyncpa [#allocation6], 0
    // Predicated region
    $region2: #{simple_mlp_forward.1} parent=1 // pred_check
      _
    $region3: #{simple_mlp_forward.1} parent=1 // pred_check_branch
      %15 = sbr.rel (0) target = $region5
    $region4: #{simple_mlp_forward.1} parent=1 // pred_region
      _
    $region5: #{simple_mlp_forward.1} parent=1 // pred_fallthru
      _
    // Predicated region
    $region6: #{simple_mlp_forward.1} parent=1 // pred_check
      _
    $region7: #{simple_mlp_forward.1} parent=1 // pred_check_branch
      %17 = sbr.rel (0) target = $region9
    $region8: #{simple_mlp_forward.1} parent=1 // pred_region
      %s19 = ssub.s32 1024, 1024
      %20 = vsyncadd [#allocation4], %s19
      %s21 = sshll.u32 [#allocation3], 4
      %s22 = int_to_ptr.vmem [resolvable:$true] %s21
      %27 = dma.hbm_to_vmem [thread:$0]  %s1, 1024, %s22, [#allocation4], 64, 64, 4
    $region9: #{simple_mlp_forward.1} parent=1 // pred_fallthru
      _
    // Predicated region
    $region10: #{simple_mlp_forward.1} parent=1 // pred_check
      _
    $region11: #{simple_mlp_forward.1} parent=1 // pred_check_branch
      %29 = sbr.rel (0) target = $region13
    $region12: #{simple_mlp_forward.1} parent=1 // pred_region
      _
    $region13: #{simple_mlp_forward.1} parent=1 // pred_fallthru
      _
    // Predicated region
    $region14: #{simple_mlp_forward.1} parent=1 // pred_check
      _
    $region15: #{simple_mlp_forward.1} parent=1 // pred_check_branch
      %31 = sbr.rel (0) target = $region17
    $region16: #{simple_mlp_forward.1} parent=1 // pred_region
      %s33 = ssub.s32 2048, 2048
      %34 = vsyncadd [#allocation6], %s33
      %s35 = sshll.u32 [#allocation5], 4
      %s36 = int_to_ptr.vmem [resolvable:$true] %s35
      %41 = dma.hbm_to_vmem [thread:$0]  %s3, 2048, %s36, [#allocation6], 64, 64, 4
    $region17: #{simple_mlp_forward.1} parent=1 // pred_fallthru
      _
    // Predicated region
    $region18: #{simple_mlp_forward.1} parent=1 // pred_check
      _
    $region19: #{simple_mlp_forward.1} parent=1 // pred_check_branch
      %43 = sbr.rel (0) target = $region21
    $region20: #{simple_mlp_forward.1} parent=1 // pred_region
      _
    $region21: #{simple_mlp_forward.1} parent=1 // pred_fallthru
      _
    // Predicated region
    $region22: #{simple_mlp_forward.1} parent=1 // pred_check
      _
    $region23: #{simple_mlp_forward.1} parent=1 // pred_check_branch
      %45 = sbr.rel (0) target = $region25
    $region24: #{simple_mlp_forward.1} parent=1 // pred_region
      %s47 = ssub.s32 1024, 1024
      %48 = vsyncadd [#allocation6], %s47
      %s49 = sshll.u32 [#allocation7], 4
      %s50 = int_to_ptr.vmem [resolvable:$true] %s49
      %55 = dma.hbm_to_vmem [thread:$0]  %s5, 1024, %s50, [#allocation6], 64, 64, 4
    $region25: #{simple_mlp_forward.1} parent=1 // pred_fallthru
      _
    // Predicated region
    $region26: #{simple_mlp_forward.1} parent=1 // pred_check
      _
    $region27: #{simple_mlp_forward.1} parent=1 // pred_check_branch
      %57 = sbr.rel (0) target = $region29
    $region28: #{simple_mlp_forward.1} parent=1 // pred_region
      _
    $region29: #{simple_mlp_forward.1} parent=1 // pred_fallthru
      _
    // Predicated region
    $region30: #{simple_mlp_forward.1} parent=1 // pred_check
      _
    $region31: #{simple_mlp_forward.1} parent=1 // pred_check_branch
      %59 = sbr.rel (0) target = $region33
    $region32: #{simple_mlp_forward.1} parent=1 // pred_region
      %60 = dma.done [#allocation4], 1024
    $region33: #{simple_mlp_forward.1} parent=1 // pred_fallthru
      _
    // Predicated region
    $region34: #{simple_mlp_forward.1} parent=1 // pred_check
      _
    $region35: #{simple_mlp_forward.1} parent=1 // pred_check_branch
      %62 = sbr.rel (0) target = $region37
    $region36: #{simple_mlp_forward.1} parent=1 // pred_region
      %63 = dma.done [#allocation6], 2048
    $region37: #{simple_mlp_forward.1} parent=1 // pred_fallthru
      _
    // Predicated region
    $region38: #{simple_mlp_forward.1} parent=1 // pred_check
      _
    $region39: #{simple_mlp_forward.1} parent=1 // pred_check_branch
      %65 = sbr.rel (0) target = $region41
    $region40: #{simple_mlp_forward.1} parent=1 // pred_region
      %66 = dma.done [#allocation6], 1024
    $region41: #{simple_mlp_forward.1} parent=1 // pred_fallthru
      _
    %v68 = vld [vmem:[%s0] sm:$0xf]
    %v69 = vld [vmem:[#allocation3] sm:$0xf]
    %v70 = vld [vmem:[#allocation3 + $0x4] sm:$0xf]
    %v71 = vld [vmem:[#allocation3 + $0x8] sm:$0xf]
    %v72 = vld [vmem:[#allocation3 + $0xc] sm:$0xf]
    %v73 = vld [vmem:[#allocation3 + $0x10] sm:$0xf]
    %v74 = vld [vmem:[#allocation3 + $0x14] sm:$0xf]
    %v75 = vld [vmem:[#allocation3 + $0x18] sm:$0xf]
    %v76 = vld [vmem:[#allocation3 + $0x1c] sm:$0xf]
    %v77 = vld [vmem:[#allocation3 + $0x20] sm:$0xf]
    %v78 = vld [vmem:[#allocation3 + $0x24] sm:$0xf]
    %v79 = vld [vmem:[#allocation3 + $0x28] sm:$0xf]
    %v80 = vld [vmem:[#allocation3 + $0x2c] sm:$0xf]
    %v81 = vld [vmem:[#allocation3 + $0x30] sm:$0xf]
    %v82 = vld [vmem:[#allocation3 + $0x34] sm:$0xf]
    %v83 = vld [vmem:[#allocation3 + $0x38] sm:$0xf]
    %v84 = vld [vmem:[#allocation3 + $0x3c] sm:$0xf]
    %v85 = vld [vmem:[%s2] sm:$0x1]
    %v86 = vunpack.c.l.bf16 %v85
    %v87 = vlaneseq
    %v88 = vshrl.u32 %v87, 7
    %v89 = vsub.s32 0, %v88
    %v90 = vrot.slane %v86, %v89
    %v107 = vunpack.c.l.b16 %v69
    %v108 = vunpack.c.l.b16 %v70
    %v109 = vunpack.c.l.b16 %v71
    %v110 = vunpack.c.l.b16 %v72
    %v111 = vunpack.c.l.b16 %v73
    %v112 = vunpack.c.l.b16 %v74
    %v113 = vunpack.c.l.b16 %v75
    %v114 = vunpack.c.l.b16 %v76
    %v115 = vunpack.c.l.b16 %v77
    %v116 = vunpack.c.l.b16 %v78
    %v117 = vunpack.c.l.b16 %v79
    %v118 = vunpack.c.l.b16 %v80
    %v119 = vunpack.c.l.b16 %v81
    %v120 = vunpack.c.l.b16 %v82
    %v121 = vunpack.c.l.b16 %v83
    %v122 = vunpack.c.l.b16 %v84
    %v123 = vpack.c.b16 %v108, %v107
    %v124 = vpack.c.b16 %v110, %v109
    %v125 = vpack.c.b16 %v112, %v111
    %v126 = vpack.c.b16 %v114, %v113
    %v127 = vpack.c.b16 %v116, %v115
    %v128 = vpack.c.b16 %v118, %v117
    %v129 = vpack.c.b16 %v120, %v119
    %v130 = vpack.c.b16 %v122, %v121
    %139 = vmatprep.subr.bf16.mxu0 0
    %140 = vmatpush1.bf16.msra.mxu0 %v123
    %141 = vmatprep.subr.bf16.mxu0 0
    %142 = vmatpush1.bf16.msra.mxu0 %v124
    %143 = vmatprep.subr.bf16.mxu0 0
    %144 = vmatpush1.bf16.msra.mxu0 %v125
    %145 = vmatprep.subr.bf16.mxu0 0
    %146 = vmatpush1.bf16.msra.mxu0 %v126
    %147 = vmatprep.subr.bf16.mxu0 0
    %148 = vmatpush1.bf16.msra.mxu0 %v127
    %149 = vmatprep.subr.bf16.mxu0 0
    %150 = vmatpush1.bf16.msra.mxu0 %v128
    %151 = vmatprep.subr.bf16.mxu0 0
    %152 = vmatpush1.bf16.msra.mxu0 %v129
    %153 = vmatprep.subr.bf16.mxu0 0
    %154 = vmatpush1.bf16.msra.mxu0 %v130
    %155 = vmatprep.subr.bf16.mxu0 0
    %156 = vmatpush1.bf16.msra.mxu0 0
    %157 = vmatprep.subr.bf16.mxu0 0
    %158 = vmatpush1.bf16.msra.mxu0 0
    %159 = vmatprep.subr.bf16.mxu0 0
    %160 = vmatpush1.bf16.msra.mxu0 0
    %161 = vmatprep.subr.bf16.mxu0 0
    %162 = vmatpush1.bf16.msra.mxu0 0
    %163 = vmatprep.subr.bf16.mxu0 0
    %164 = vmatpush1.bf16.msra.mxu0 0
    %165 = vmatprep.subr.bf16.mxu0 0
    %166 = vmatpush1.bf16.msra.mxu0 0
    %167 = vmatprep.subr.bf16.mxu0 0
    %168 = vmatpush1.bf16.msra.mxu0 0
    %169 = vmatprep.subr.bf16.mxu0 0
    %170 = vmatpush1.bf16.msra.mxu0 0
    %171 = vmatprep.mubr.bf16.mxu0 0
    %172 = vmatmul.mubr.bf16.gmra.mrb[0].mxu0 %v68
    %v173 = vpop.f32.mrb[0].mxu0
    %v174 = vadd.f32 %v90, %v173
    %v175 = vpop.f32.mrb[0].mxu0
    %v176 = vpop.f32.mrb[0].mxu0
    %v177 = vpop.f32.mrb[0].mxu0
    %178 = vdwg.mxu0
    %v179 = vpack.c.bf16 %v174, %v174
    %180 = vst [vmem:[#allocation2] sm:$0xf] %v179
    %v181 = vld [vmem:[#allocation2] sm:$0xf]
    %v182 = vld [vmem:[#allocation5] sm:$0xf]
    %v183 = vld [vmem:[#allocation5 + $0x4] sm:$0xf]
    %v184 = vld [vmem:[#allocation5 + $0x8] sm:$0xf]
    %v185 = vld [vmem:[#allocation5 + $0xc] sm:$0xf]
    %v186 = vld [vmem:[#allocation5 + $0x10] sm:$0xf]
    %v187 = vld [vmem:[#allocation5 + $0x14] sm:$0xf]
    %v188 = vld [vmem:[#allocation5 + $0x18] sm:$0xf]
    %v189 = vld [vmem:[#allocation5 + $0x1c] sm:$0xf]
    %v190 = vld [vmem:[#allocation5 + $0x20] sm:$0xf]
    %v191 = vld [vmem:[#allocation5 + $0x24] sm:$0xf]
    %v192 = vld [vmem:[#allocation5 + $0x28] sm:$0xf]
    %v193 = vld [vmem:[#allocation5 + $0x2c] sm:$0xf]
    %v194 = vld [vmem:[#allocation5 + $0x30] sm:$0xf]
    %v195 = vld [vmem:[#allocation5 + $0x34] sm:$0xf]
    %v196 = vld [vmem:[#allocation5 + $0x38] sm:$0xf]
    %v197 = vld [vmem:[#allocation5 + $0x3c] sm:$0xf]
    %v198 = vld [vmem:[%s4] sm:$0x1]
    %v199 = vunpack.c.l.bf16 %v198
    %v200 = vlaneseq
    %v201 = vshrl.u32 %v200, 7
    %v202 = vsub.s32 0, %v201
    %v203 = vrot.slane %v199, %v202
    %v220 = vunpack.c.l.b16 %v182
    %v221 = vunpack.c.l.b16 %v183
    %v222 = vunpack.c.l.b16 %v184
    %v223 = vunpack.c.l.b16 %v185
    %v224 = vunpack.c.l.b16 %v186
    %v225 = vunpack.c.l.b16 %v187
    %v226 = vunpack.c.l.b16 %v188
    %v227 = vunpack.c.l.b16 %v189
    %v228 = vunpack.c.l.b16 %v190
    %v229 = vunpack.c.l.b16 %v191
    %v230 = vunpack.c.l.b16 %v192
    %v231 = vunpack.c.l.b16 %v193
    %v232 = vunpack.c.l.b16 %v194
    %v233 = vunpack.c.l.b16 %v195
    %v234 = vunpack.c.l.b16 %v196
    %v235 = vunpack.c.l.b16 %v197
    %v236 = vpack.c.b16 %v221, %v220
    %v237 = vpack.c.b16 %v223, %v222
    %v238 = vpack.c.b16 %v225, %v224
    %v239 = vpack.c.b16 %v227, %v226
    %v240 = vpack.c.b16 %v229, %v228
    %v241 = vpack.c.b16 %v231, %v230
    %v242 = vpack.c.b16 %v233, %v232
    %v243 = vpack.c.b16 %v235, %v234
    %252 = vmatprep.subr.bf16.mxu0 0
    %253 = vmatpush1.bf16.msra.mxu0 %v236
    %254 = vmatprep.subr.bf16.mxu0 0
    %255 = vmatpush1.bf16.msra.mxu0 %v237
    %256 = vmatprep.subr.bf16.mxu0 0
    %257 = vmatpush1.bf16.msra.mxu0 %v238
    %258 = vmatprep.subr.bf16.mxu0 0
    %259 = vmatpush1.bf16.msra.mxu0 %v239
    %260 = vmatprep.subr.bf16.mxu0 0
    %261 = vmatpush1.bf16.msra.mxu0 %v240
    %262 = vmatprep.subr.bf16.mxu0 0
    %263 = vmatpush1.bf16.msra.mxu0 %v241
    %264 = vmatprep.subr.bf16.mxu0 0
    %265 = vmatpush1.bf16.msra.mxu0 %v242
    %266 = vmatprep.subr.bf16.mxu0 0
    %267 = vmatpush1.bf16.msra.mxu0 %v243
    %268 = vmatprep.subr.bf16.mxu0 0
    %269 = vmatpush1.bf16.msra.mxu0 0
    %270 = vmatprep.subr.bf16.mxu0 0
    %271 = vmatpush1.bf16.msra.mxu0 0
    %272 = vmatprep.subr.bf16.mxu0 0
    %273 = vmatpush1.bf16.msra.mxu0 0
    %274 = vmatprep.subr.bf16.mxu0 0
    %275 = vmatpush1.bf16.msra.mxu0 0
    %276 = vmatprep.subr.bf16.mxu0 0
    %277 = vmatpush1.bf16.msra.mxu0 0
    %278 = vmatprep.subr.bf16.mxu0 0
    %279 = vmatpush1.bf16.msra.mxu0 0
    %280 = vmatprep.subr.bf16.mxu0 0
    %281 = vmatpush1.bf16.msra.mxu0 0
    %282 = vmatprep.subr.bf16.mxu0 0
    %283 = vmatpush1.bf16.msra.mxu0 0
    %284 = vmatprep.mubr.bf16.mxu0 0
    %285 = vmatmul.mubr.bf16.gmra.mrb[0].mxu0 %v181
    %v286 = vpop.f32.mrb[0].mxu0
    %v287 = vadd.f32 %v203, %v286
    %v288 = vpop.f32.mrb[0].mxu0
    %v289 = vpop.f32.mrb[0].mxu0
    %v290 = vpop.f32.mrb[0].mxu0
    %291 = vdwg.mxu0
    %v292 = vmax.f32 %v287, 0.0
    %v293 = vpack.c.bf16 %v292, %v292
    %294 = vst [vmem:[#allocation2] sm:$0xf] %v293
    %v295 = vld [vmem:[#allocation2] sm:$0xf]
    %s296 = scalar_lea.vmem [#allocation5], 64
    %v297 = vld [vmem:[%s296] sm:$0xf]
    %v298 = vld [vmem:[%s296 + $0x4] sm:$0xf]
    %v299 = vld [vmem:[%s296 + $0x8] sm:$0xf]
    %v300 = vld [vmem:[%s296 + $0xc] sm:$0xf]
    %v301 = vld [vmem:[%s296 + $0x10] sm:$0xf]
    %v302 = vld [vmem:[%s296 + $0x14] sm:$0xf]
    %v303 = vld [vmem:[%s296 + $0x18] sm:$0xf]
    %v304 = vld [vmem:[%s296 + $0x1c] sm:$0xf]
    %v305 = vld [vmem:[%s296 + $0x20] sm:$0xf]
    %v306 = vld [vmem:[%s296 + $0x24] sm:$0xf]
    %v307 = vld [vmem:[%s296 + $0x28] sm:$0xf]
    %v308 = vld [vmem:[%s296 + $0x2c] sm:$0xf]
    %v309 = vld [vmem:[%s296 + $0x30] sm:$0xf]
    %v310 = vld [vmem:[%s296 + $0x34] sm:$0xf]
    %v311 = vld [vmem:[%s296 + $0x38] sm:$0xf]
    %v312 = vld [vmem:[%s296 + $0x3c] sm:$0xf]
    %s313 = scalar_lea.vmem %s4, 1
    %v314 = vld [vmem:[%s313] sm:$0x1]
    %v315 = vunpack.c.l.bf16 %v314
    %v316 = vlaneseq
    %v317 = vshrl.u32 %v316, 7
    %v318 = vsub.s32 0, %v317
    %v319 = vrot.slane %v315, %v318
    %v336 = vunpack.c.l.b16 %v297
    %v337 = vunpack.c.l.b16 %v298
    %v338 = vunpack.c.l.b16 %v299
    %v339 = vunpack.c.l.b16 %v300
    %v340 = vunpack.c.l.b16 %v301
    %v341 = vunpack.c.l.b16 %v302
    %v342 = vunpack.c.l.b16 %v303
    %v343 = vunpack.c.l.b16 %v304
    %v344 = vunpack.c.l.b16 %v305
    %v345 = vunpack.c.l.b16 %v306
    %v346 = vunpack.c.l.b16 %v307
    %v347 = vunpack.c.l.b16 %v308
    %v348 = vunpack.c.l.b16 %v309
    %v349 = vunpack.c.l.b16 %v310
    %v350 = vunpack.c.l.b16 %v311
    %v351 = vunpack.c.l.b16 %v312
    %v352 = vpack.c.b16 %v337, %v336
    %v353 = vpack.c.b16 %v339, %v338
    %v354 = vpack.c.b16 %v341, %v340
    %v355 = vpack.c.b16 %v343, %v342
    %v356 = vpack.c.b16 %v345, %v344
    %v357 = vpack.c.b16 %v347, %v346
    %v358 = vpack.c.b16 %v349, %v348
    %v359 = vpack.c.b16 %v351, %v350
    %368 = vmatprep.subr.bf16.mxu0 0
    %369 = vmatpush1.bf16.msra.mxu0 %v352
    %370 = vmatprep.subr.bf16.mxu0 0
    %371 = vmatpush1.bf16.msra.mxu0 %v353
    %372 = vmatprep.subr.bf16.mxu0 0
    %373 = vmatpush1.bf16.msra.mxu0 %v354
    %374 = vmatprep.subr.bf16.mxu0 0
    %375 = vmatpush1.bf16.msra.mxu0 %v355
    %376 = vmatprep.subr.bf16.mxu0 0
    %377 = vmatpush1.bf16.msra.mxu0 %v356
    %378 = vmatprep.subr.bf16.mxu0 0
    %379 = vmatpush1.bf16.msra.mxu0 %v357
    %380 = vmatprep.subr.bf16.mxu0 0
    %381 = vmatpush1.bf16.msra.mxu0 %v358
    %382 = vmatprep.subr.bf16.mxu0 0
    %383 = vmatpush1.bf16.msra.mxu0 %v359
    %384 = vmatprep.subr.bf16.mxu0 0
    %385 = vmatpush1.bf16.msra.mxu0 0
    %386 = vmatprep.subr.bf16.mxu0 0
    %387 = vmatpush1.bf16.msra.mxu0 0
    %388 = vmatprep.subr.bf16.mxu0 0
    %389 = vmatpush1.bf16.msra.mxu0 0
    %390 = vmatprep.subr.bf16.mxu0 0
    %391 = vmatpush1.bf16.msra.mxu0 0
    %392 = vmatprep.subr.bf16.mxu0 0
    %393 = vmatpush1.bf16.msra.mxu0 0
    %394 = vmatprep.subr.bf16.mxu0 0
    %395 = vmatpush1.bf16.msra.mxu0 0
    %396 = vmatprep.subr.bf16.mxu0 0
    %397 = vmatpush1.bf16.msra.mxu0 0
    %398 = vmatprep.subr.bf16.mxu0 0
    %399 = vmatpush1.bf16.msra.mxu0 0
    %400 = vmatprep.mubr.bf16.mxu0 0
    %401 = vmatmul.mubr.bf16.gmra.mrb[0].mxu0 %v295
    %v402 = vpop.f32.mrb[0].mxu0
    %v403 = vadd.f32 %v319, %v402
    %v404 = vpop.f32.mrb[0].mxu0
    %v405 = vpop.f32.mrb[0].mxu0
    %v406 = vpop.f32.mrb[0].mxu0
    %407 = vdwg.mxu0
    %v408 = vmax.f32 %v403, 0.0
    %v409 = vpack.c.bf16 %v408, %v408
    %410 = vst [vmem:[#allocation2] sm:$0xf] %v409
    %v411 = vld [vmem:[#allocation2] sm:$0xf]
    %v412 = vld [vmem:[#allocation7] sm:$0xf]
    %v413 = vld [vmem:[#allocation7 + $0x4] sm:$0xf]
    %v414 = vld [vmem:[#allocation7 + $0x8] sm:$0xf]
    %v415 = vld [vmem:[#allocation7 + $0xc] sm:$0xf]
    %v416 = vld [vmem:[#allocation7 + $0x10] sm:$0xf]
    %v417 = vld [vmem:[#allocation7 + $0x14] sm:$0xf]
    %v418 = vld [vmem:[#allocation7 + $0x18] sm:$0xf]
    %v419 = vld [vmem:[#allocation7 + $0x1c] sm:$0xf]
    %v420 = vld [vmem:[#allocation7 + $0x20] sm:$0xf]
    %v421 = vld [vmem:[#allocation7 + $0x24] sm:$0xf]
    %v422 = vld [vmem:[#allocation7 + $0x28] sm:$0xf]
    %v423 = vld [vmem:[#allocation7 + $0x2c] sm:$0xf]
    %v424 = vld [vmem:[#allocation7 + $0x30] sm:$0xf]
    %v425 = vld [vmem:[#allocation7 + $0x34] sm:$0xf]
    %v426 = vld [vmem:[#allocation7 + $0x38] sm:$0xf]
    %v427 = vld [vmem:[#allocation7 + $0x3c] sm:$0xf]
    %v428 = vld [vmem:[%s6] sm:$0x1]
    %v429 = vunpack.c.l.bf16 %v428
    %v430 = vlaneseq
    %v431 = vshrl.u32 %v430, 7
    %v432 = vsub.s32 0, %v431
    %v433 = vrot.slane %v429, %v432
    %v450 = vunpack.c.l.b16 %v412
    %v451 = vunpack.c.l.b16 %v413
    %v452 = vunpack.c.l.b16 %v414
    %v453 = vunpack.c.l.b16 %v415
    %v454 = vunpack.c.l.b16 %v416
    %v455 = vunpack.c.l.b16 %v417
    %v456 = vunpack.c.l.b16 %v418
    %v457 = vunpack.c.l.b16 %v419
    %v458 = vunpack.c.l.b16 %v420
    %v459 = vunpack.c.l.b16 %v421
    %v460 = vunpack.c.l.b16 %v422
    %v461 = vunpack.c.l.b16 %v423
    %v462 = vunpack.c.l.b16 %v424
    %v463 = vunpack.c.l.b16 %v425
    %v464 = vunpack.c.l.b16 %v426
    %v465 = vunpack.c.l.b16 %v427
    %v466 = vpack.c.b16 %v451, %v450
    %v467 = vpack.c.b16 %v453, %v452
    %v468 = vpack.c.b16 %v455, %v454
    %v469 = vpack.c.b16 %v457, %v456
    %v470 = vpack.c.b16 %v459, %v458
    %v471 = vpack.c.b16 %v461, %v460
    %v472 = vpack.c.b16 %v463, %v462
    %v473 = vpack.c.b16 %v465, %v464
    %482 = vmatprep.subr.bf16.mxu0 0
    %483 = vmatpush1.bf16.msra.mxu0 %v466
    %484 = vmatprep.subr.bf16.mxu0 0
    %485 = vmatpush1.bf16.msra.mxu0 %v467
    %486 = vmatprep.subr.bf16.mxu0 0
    %487 = vmatpush1.bf16.msra.mxu0 %v468
    %488 = vmatprep.subr.bf16.mxu0 0
    %489 = vmatpush1.bf16.msra.mxu0 %v469
    %490 = vmatprep.subr.bf16.mxu0 0
    %491 = vmatpush1.bf16.msra.mxu0 %v470
    %492 = vmatprep.subr.bf16.mxu0 0
    %493 = vmatpush1.bf16.msra.mxu0 %v471
    %494 = vmatprep.subr.bf16.mxu0 0
    %495 = vmatpush1.bf16.msra.mxu0 %v472
    %496 = vmatprep.subr.bf16.mxu0 0
    %497 = vmatpush1.bf16.msra.mxu0 %v473
    %498 = vmatprep.subr.bf16.mxu0 0
    %499 = vmatpush1.bf16.msra.mxu0 0
    %500 = vmatprep.subr.bf16.mxu0 0
    %501 = vmatpush1.bf16.msra.mxu0 0
    %502 = vmatprep.subr.bf16.mxu0 0
    %503 = vmatpush1.bf16.msra.mxu0 0
    %504 = vmatprep.subr.bf16.mxu0 0
    %505 = vmatpush1.bf16.msra.mxu0 0
    %506 = vmatprep.subr.bf16.mxu0 0
    %507 = vmatpush1.bf16.msra.mxu0 0
    %508 = vmatprep.subr.bf16.mxu0 0
    %509 = vmatpush1.bf16.msra.mxu0 0
    %510 = vmatprep.subr.bf16.mxu0 0
    %511 = vmatpush1.bf16.msra.mxu0 0
    %512 = vmatprep.subr.bf16.mxu0 0
    %513 = vmatpush1.bf16.msra.mxu0 0
    %514 = vmatprep.mubr.bf16.mxu0 0
    %515 = vmatmul.mubr.bf16.gmra.mrb[0].mxu0 %v411
    %v516 = vpop.f32.mrb[0].mxu0
    %v517 = vadd.f32 %v433, %v516
    %v518 = vpop.f32.mrb[0].mxu0
    %v519 = vpop.f32.mrb[0].mxu0
    %v520 = vpop.f32.mrb[0].mxu0
    %521 = vdwg.mxu0
    %522 = vst [vmem:[%s7] sm:$0xff] %v517
    // Predicated region
    $region42: #{simple_mlp_forward.1} parent=1 // pred_check
      _
    $region43: #{simple_mlp_forward.1} parent=1 // pred_check_branch
      %524 = sbr.rel (0) target = $region45
    $region44: #{simple_mlp_forward.1} parent=1 // pred_region
      _
    $region45: #{simple_mlp_forward.1} parent=1 // pred_fallthru
      _
    // Predicated region
    $region46: #{simple_mlp_forward.1} parent=1 // pred_check
      _
    $region47: #{simple_mlp_forward.1} parent=1 // pred_check_branch
      %526 = sbr.rel (0) target = $region49
    $region48: #{simple_mlp_forward.1} parent=1 // pred_region
      _
    $region49: #{simple_mlp_forward.1} parent=1 // pred_fallthru
      _
    %527 = vsyncpa [#allocation4], 1
    %528 = vsyncpa [#allocation6], 1

</llo_original>
